<compile_context>
chip_gen: v7x
topology: tpu7x:2x2x1
jax: 0.10.0
libtpu: 0.0.40
codegen_flags: <defaults>
</compile_context>

<pallas_src>
import functools

import jax
import jax.numpy as jnp
from jax.experimental import pallas as pl
from jax.experimental.pallas import tpu as pltpu


def _round_up(x, m):
    return (x + m - 1) // m * m


def _nce_loss_kernel(lt_ref, li_ref, lab_ref, out_ref, *, n_total, tm):
    # lt_ref / li_ref: (TM, C) logits tile (f32 or bf16); lab_ref: (TM, 1) int32.
    lt = lt_ref[...].astype(jnp.float32)
    li = li_ref[...].astype(jnp.float32)
    lab = lab_ref[...]

    c = lt.shape[-1]

    # One-hot built once per tile, shared by both cross-entropy terms.
    cls = jax.lax.broadcasted_iota(jnp.int32, (tm, c), 1)
    onehot = (cls == lab).astype(jnp.float32)

    def ce_rows(logits):
        m = jnp.max(logits, axis=-1, keepdims=True)
        shifted = logits - m  # reused by both exp() and the picked-logit term
        lse = jnp.log(jnp.sum(jnp.exp(shifted), axis=-1, keepdims=True))
        picked = jnp.sum(shifted * onehot, axis=-1, keepdims=True)
        return lse - picked  # (TM, 1) per-row cross entropy

    ce = ce_rows(lt) + ce_rows(li)  # (TM, 1)

    # Mask padded tail rows of the final batch tile.
    i = pl.program_id(0)
    row = jax.lax.broadcasted_iota(jnp.int32, (tm, 1), 0) + i * tm
    ce = jnp.where(row < n_total, ce, 0.0)

    # Per-tile partial, pre-scaled by 1/(2N) so the wrapper just sums.
    partial = jnp.sum(ce) * jnp.float32(1.0 / (2.0 * n_total))

    # Lane-dense (1, 8, 128) slab -> full unmasked vector store, independent per tile.
    out_ref[...] = jnp.full(out_ref.shape, partial, dtype=jnp.float32)


def nce_loss(logits_per_table, logits_per_image, label, *, tm=None):
    """Pallas equivalent of:
         0.5 * (F.cross_entropy(logits_per_table, label)
                + F.cross_entropy(logits_per_image, label))
    Returns a scalar float32 loss (mean reduction, labels assumed in [0, C))."""
    n, c = logits_per_table.shape
    assert logits_per_image.shape == (n, c)
    itemsize = jnp.dtype(logits_per_table.dtype).itemsize

    if tm is None:
        # Keep 2 inputs x 2 pipeline buffers x TM x C x itemsize <= ~8 MiB:
        # comfortably inside v7x's 32 MiB scoped / 64 MiB physical VMEM and
        # leaves headroom for the in-kernel f32 temporaries.
        budget = 8 * 1024 * 1024
        tm = budget // max(1, 4 * c * itemsize)
        tm = max(16, min(512, (tm // 16) * 16))  # multiple of 16: bf16-friendly
    tm = min(tm, _round_up(n, 8))
    tm = _round_up(tm, 8)

    num_tiles = (n + tm - 1) // tm
    lab2d = label.astype(jnp.int32).reshape(n, 1)

    kernel = functools.partial(_nce_loss_kernel, n_total=n, tm=tm)

    partials = pl.pallas_call(
        kernel,
        out_shape=jax.ShapeDtypeStruct((num_tiles, 8, 128), jnp.float32),
        grid=(num_tiles,),
        in_specs=[
            pl.BlockSpec((tm, c), lambda i: (i, 0)),
            pl.BlockSpec((tm, c), lambda i: (i, 0)),
            pl.BlockSpec((tm, 1), lambda i: (i, 0)),
        ],
        out_specs=pl.BlockSpec((1, 8, 128), lambda i: (i, 0, 0)),
        compiler_params=pltpu.CompilerParams(
            dimension_semantics=("parallel",),      # independent per-tile partials
            vmem_limit_bytes=32 * 1024 * 1024,      # safe on v5e/v6e/v7x for this TM budget
        ),
        cost_estimate=pl.CostEstimate(
            flops=10 * n * c,
            transcendentals=2 * n * c,
            bytes_accessed=2 * n * c * itemsize + n * 4 + num_tiles * 8 * 128 * 4,
        ),
    )(logits_per_table, logits_per_image, lab2d)

    # Tiny final reduction of per-tile partials (each already scaled by 1/(2N)).
    return jnp.sum(partials[:, 0, 0])


if __name__ == "__main__":
    key = jax.random.PRNGKey(0)
    k1, k2, k3 = jax.random.split(key, 3)

    # CLIP-style contrastive logits. N deliberately not a multiple of the tile
    # size to exercise the padded-row masking path.
    N, C = 28, 128
    logits_per_table = jax.random.normal(k1, (N, C), dtype=jnp.float32)
    logits_per_image = jax.random.normal(k2, (N, C), dtype=jnp.float32)
    label = jax.random.randint(k3, (N,), 0, C, dtype=jnp.int32)

    # Pure-JAX reference (log-softmax cross entropy, mean reduction).
    def ce_ref(logits, lab):
        logp = jax.nn.log_softmax(logits.astype(jnp.float32), axis=-1)
        return -jnp.mean(logp[jnp.arange(logits.shape[0]), lab])

    ref = 0.5 * (ce_ref(logits_per_table, label) + ce_ref(logits_per_image, label))

    # Multi-tile path: grid of 4, masked tail rows on the last tile.
    loss = nce_loss(logits_per_table, logits_per_image, label, tm=8)
    jax.block_until_ready(loss)
    assert jnp.allclose(loss, ref, atol=1e-5, rtol=1e-5), (loss, ref)

    # Auto tile-size path (single tile at this small shape).
    loss_auto = nce_loss(logits_per_table, logits_per_image, label)
    jax.block_until_ready(loss_auto)
    assert jnp.allclose(loss_auto, ref, atol=1e-5, rtol=1e-5), (loss_auto, ref)

    # bf16 inputs (autocast-style, halves HBM traffic); kernel casts to f32 in-VMEM.
    loss_bf16 = nce_loss(
        logits_per_table.astype(jnp.bfloat16),
        logits_per_image.astype(jnp.bfloat16),
        label,
        tm=16,
    )
    jax.block_until_ready(loss_bf16)
    assert jnp.allclose(loss_bf16, ref, atol=5e-2, rtol=5e-2), (loss_bf16, ref)

    print("KERNEL_OK")
</pallas_src>

<mosaic_0001>
module attributes {stable_mosaic.version = 11 : i64} {
  func.func @_nce_loss_kernel(%arg0: i32, %arg1: memref<8x128xf32, #tpu.memory_space<vmem>>, %arg2: memref<8x128xf32, #tpu.memory_space<vmem>>, %arg3: memref<8x1xi32, #tpu.memory_space<vmem>>, %arg4: memref<1x8x128xf32, #tpu.memory_space<vmem>>) attributes {dimension_semantics = [#tpu.dimension_semantics<parallel>], iteration_bounds = array<i64: 4>, scalar_prefetch = 0 : i64, scratch_operands = 0 : i64, tpu.core_type = #tpu.core_type<tc>, window_params = [{transform_indices = @transform_0, window_bounds = array<i64: 8, 128>}, {transform_indices = @transform_1, window_bounds = array<i64: 8, 128>}, {transform_indices = @transform_2, window_bounds = array<i64: 8, 1>}, {transform_indices = @transform_3, window_bounds = array<i64: 1, 8, 128>}]} {
    %c0 = arith.constant 0 : index
    %c0_0 = arith.constant 0 : index
    %0 = vector.load %arg1[%c0, %c0_0] : memref<8x128xf32, #tpu.memory_space<vmem>>, vector<8x128xf32>
    %c0_1 = arith.constant 0 : index
    %c0_2 = arith.constant 0 : index
    %1 = vector.load %arg2[%c0_1, %c0_2] : memref<8x128xf32, #tpu.memory_space<vmem>>, vector<8x128xf32>
    %c0_3 = arith.constant 0 : index
    %c0_4 = arith.constant 0 : index
    %2 = vector.load %arg3[%c0_3, %c0_4] : memref<8x1xi32, #tpu.memory_space<vmem>>, vector<8x1xi32>
    %3 = tpu.iota {dimensions = array<i32: 1>} : vector<8x128xi32>
    %4 = vector.broadcast %2 : vector<8x1xi32> to vector<8x128xi32>
    %5 = arith.cmpi eq, %3, %4 : vector<8x128xi32>
    %6 = arith.extui %5 : vector<8x128xi1> to vector<8x128xi32>
    %7 = arith.sitofp %6 : vector<8x128xi32> to vector<8x128xf32>
    %cst = arith.constant dense<0xFF800000> : vector<8xf32>
    %8 = vector.multi_reduction <maximumf>, %0, %cst [1] : vector<8x128xf32> to vector<8xf32>
    %9 = vector.shape_cast %8 : vector<8xf32> to vector<8x1xf32>
    %10 = vector.broadcast %9 : vector<8x1xf32> to vector<8x128xf32>
    %11 = arith.subf %0, %10 : vector<8x128xf32>
    %12 = math.exp %11 : vector<8x128xf32>
    %cst_5 = arith.constant dense<0.000000e+00> : vector<8xf32>
    %13 = vector.multi_reduction <add>, %12, %cst_5 [1] : vector<8x128xf32> to vector<8xf32>
    %14 = vector.shape_cast %13 : vector<8xf32> to vector<8x1xf32>
    %15 = math.log %14 : vector<8x1xf32>
    %16 = arith.mulf %11, %7 : vector<8x128xf32>
    %cst_6 = arith.constant dense<0.000000e+00> : vector<8xf32>
    %17 = vector.multi_reduction <add>, %16, %cst_6 [1] : vector<8x128xf32> to vector<8xf32>
    %18 = vector.shape_cast %17 : vector<8xf32> to vector<8x1xf32>
    %19 = arith.subf %15, %18 : vector<8x1xf32>
    %cst_7 = arith.constant dense<0xFF800000> : vector<8xf32>
    %20 = vector.multi_reduction <maximumf>, %1, %cst_7 [1] : vector<8x128xf32> to vector<8xf32>
    %21 = vector.shape_cast %20 : vector<8xf32> to vector<8x1xf32>
    %22 = vector.broadcast %21 : vector<8x1xf32> to vector<8x128xf32>
    %23 = arith.subf %1, %22 : vector<8x128xf32>
    %24 = math.exp %23 : vector<8x128xf32>
    %cst_8 = arith.constant dense<0.000000e+00> : vector<8xf32>
    %25 = vector.multi_reduction <add>, %24, %cst_8 [1] : vector<8x128xf32> to vector<8xf32>
    %26 = vector.shape_cast %25 : vector<8xf32> to vector<8x1xf32>
    %27 = math.log %26 : vector<8x1xf32>
    %28 = arith.mulf %23, %7 : vector<8x128xf32>
    %cst_9 = arith.constant dense<0.000000e+00> : vector<8xf32>
    %29 = vector.multi_reduction <add>, %28, %cst_9 [1] : vector<8x128xf32> to vector<8xf32>
    %30 = vector.shape_cast %29 : vector<8xf32> to vector<8x1xf32>
    %31 = arith.subf %27, %30 : vector<8x1xf32>
    %32 = arith.addf %19, %31 : vector<8x1xf32>
    %33 = tpu.iota {dimensions = array<i32: 0>} : vector<8x1xi32>
    %c8_i32 = arith.constant 8 : i32
    %34 = arith.muli %arg0, %c8_i32 : i32
    %35 = vector.broadcast %34 : i32 to vector<8x1xi32>
    %36 = arith.addi %33, %35 : vector<8x1xi32>
    %c28_i32 = arith.constant 28 : i32
    %37 = vector.broadcast %c28_i32 : i32 to vector<8x1xi32>
    %38 = arith.cmpi slt, %36, %37 : vector<8x1xi32>
    %cst_10 = arith.constant 0.000000e+00 : f32
    %39 = vector.broadcast %cst_10 : f32 to vector<8x1xf32>
    %40 = arith.select %38, %32, %39 : vector<8x1xi1>, vector<8x1xf32>
    %41 = vector.shape_cast %40 : vector<8x1xf32> to vector<1x8x1xf32>
    %cst_11 = arith.constant dense<0.000000e+00> : vector<1xf32>
    %42 = vector.multi_reduction <add>, %41, %cst_11 [1, 2] : vector<1x8x1xf32> to vector<1xf32>
    %43 = vector.shape_cast %42 : vector<1xf32> to vector<1x1x1xf32>
    %44 = vector.extract %43[0, 0, 0] : f32 from vector<1x1x1xf32>
    %cst_12 = arith.constant 0.0178571437 : f32
    %45 = arith.mulf %44, %cst_12 : f32
    %46 = vector.broadcast %45 : f32 to vector<1x8x128xf32>
    %c0_13 = arith.constant 0 : index
    %c0_14 = arith.constant 0 : index
    %c0_15 = arith.constant 0 : index
    %47 = vector.load %arg4[%c0_13, %c0_14, %c0_15] : memref<1x8x128xf32, #tpu.memory_space<vmem>>, vector<1x8x128xf32>
    tpu.vector_store %arg4[%c0_13, %c0_14, %c0_15], %46 {strides = array<i32>} : memref<1x8x128xf32, #tpu.memory_space<vmem>>, vector<1x8x128xf32>,
    return
  }
  func.func @transform_0(%arg0: i32) -> (i32, i32) {
    %c0_i32 = arith.constant 0 : i32
    %c0_i32_0 = arith.constant 0 : i32
    return %arg0, %c0_i32 : i32, i32
  }
  func.func @transform_1(%arg0: i32) -> (i32, i32) {
    %c0_i32 = arith.constant 0 : i32
    %c0_i32_0 = arith.constant 0 : i32
    return %arg0, %c0_i32 : i32, i32
  }
  func.func @transform_2(%arg0: i32) -> (i32, i32) {
    %c0_i32 = arith.constant 0 : i32
    %c0_i32_0 = arith.constant 0 : i32
    return %arg0, %c0_i32 : i32, i32
  }
  func.func @transform_3(%arg0: i32) -> (i32, i32, i32) {
    %c0_i32 = arith.constant 0 : i32
    %c0_i32_0 = arith.constant 0 : i32
    %c0_i32_1 = arith.constant 0 : i32
    return %arg0, %c0_i32, %c0_i32_0 : i32, i32, i32
  }
}

</mosaic_0001>

<llo_original>
// kernel: tpu_custom_call.1
$region0: #{tpu_custom_call.1}
  #allocation0 [shape = 'u32[]', space=smem, size = 0x4, offset = 0x4, fixed_abs, tag = 'smem constant byte address 0x4 - core index']
  #allocation1 [shape = 'u32[144,128]{1,0:T(1,128)}', space=vmem, size = 0x12000, scoped, tag = 'internal scratch']
  %s0 = inlined_call_operand.vmem [shape: f32[28,128], index: 0, kind: input, shape index: {}]
  %s1 = inlined_call_operand.hbm [shape: f32[28,128], index: 1, kind: input, shape index: {}]
  %s2 = inlined_call_operand.vmem [shape: s32[28,1], index: 2, kind: input, shape index: {}]
  %s3 = inlined_call_operand.hbm [shape: f32[4,8,128], index: 3, kind: output, shape index: {}]
  %s4 = sld [smem:[#allocation0]]
  $region49: #{tpu_custom_call.1} parent=0
    _
  %s6 = ssub.s32 1, %s4
  %s7 = scalar_select 0, %s6, %s4
  $region1: #{tpu_custom_call.1} parent=0
    #allocation2 [shape = 'u8[8192]{0}', space=vmem, size = 0x2000, scoped, tag = 'input window, operand 1']
    #allocation3 [shape = 's32[2]{0}', space=sflag, size = 0x8, scoped, tag = 'scoped memory for tpu_custom_call.1']
    #allocation4 [shape = 's32[2]{0}', space=sflag, size = 0x8, scoped, tag = 'scoped memory for tpu_custom_call.1']
    #allocation5 [shape = 'u8[8192]{0}', space=vmem, size = 0x2000, scoped, tag = 'output window, operand 0']
    %8 = vsyncpa [#allocation3], 0
    %s9 = scalar_lea.sflag [#allocation3], 1
    %10 = vsyncpa %s9, 0
    %11 = vsyncpa [#allocation4], 0
    %s12 = scalar_lea.sflag [#allocation4], 1
    %13 = vsyncpa %s12, 0
    loop: start=0, step=1, limit=6
    $region2: #{tpu_custom_call.1} parent=1 // loop_pre_header
      _
    $region3: #{tpu_custom_call.1} parent=1 // loop_header
      %s15 = sphi 0, %s19
      %p16 = scmp.ge.s32.totalorder %s15, 6
      %s25 = sphi 0, %s27
      %s28 = sphi 0, %s25
      %s29 = sphi 0, %s28
      %s45 = sphi 0, %s29
      %s51 = sphi 0, %s53
      %s54 = sphi 0, %s51
      %s55 = sphi 0, %s54
      %s71 = sphi 0, %s55
      %s77 = sphi 0, %s79
      %s80 = sphi 0, %s77
      %s81 = sphi 0, %s80
      %s97 = sphi 0, %s81
      %s103 = sphi 0, %s105
      %s106 = sphi 0, %s103
      %s107 = sphi 0, %s106
      %s123 = sphi 0, %s107
    $region4: #{tpu_custom_call.1} parent=1 // loop_header_branch
      %18 = sbr.rel (%p16) target = $region8
    $region5: #{tpu_custom_call.1} parent=1 // loop_body
      %s20 = ssub.s32 %s15, 1
      %s21 = ssub.s32 %s15, 2
      %s22 = sadd.s32 %s15, 1
      %s23 = ssub.s32 %s15, %s22
      %p24 = scmp.eq.s32.totalorder %s23, 0
      %s26 = sadd.s32 %s25, 1
      %s27 = scalar_select %p24, %s25, %s26
      %p30 = pneg %p24
      %p31 = scmp.eq.s32.totalorder %s15, 3
      %p32 = por %p30, %p31
      %p33 = scmp.ne.s32.totalorder %s25, %s28
      %p34 = scmp.eq.s32.totalorder %s15, 0
      %p35 = por %p33, %p34
      %p36 = scmp.ne.s32.totalorder %s25, %s28
      %p37 = scmp.eq.s32.totalorder %s20, 3
      %p38 = por %p36, %p37
      %p39 = scmp.ne.s32.totalorder %s28, %s29
      %p40 = scmp.eq.s32.totalorder %s20, 0
      %p41 = por %p39, %p40
      %p42 = scmp.ne.s32.totalorder %s28, %s29
      %p43 = scmp.eq.s32.totalorder %s21, 3
      %p44 = por %p42, %p43
      %p46 = scmp.ne.s32.totalorder %s29, %s45
      %p47 = scmp.eq.s32.totalorder %s21, 0
      %p48 = por %p46, %p47
      %s49 = ssub.s32 %s15, %s22
      %p50 = scmp.eq.s32.totalorder %s49, 0
      %s52 = sadd.s32 %s51, 1
      %s53 = scalar_select %p50, %s51, %s52
      %p56 = pneg %p50
      %p57 = scmp.eq.s32.totalorder %s15, 3
      %p58 = por %p56, %p57
      %p59 = scmp.ne.s32.totalorder %s51, %s54
      %p60 = scmp.eq.s32.totalorder %s15, 0
      %p61 = por %p59, %p60
      %p62 = scmp.ne.s32.totalorder %s51, %s54
      %p63 = scmp.eq.s32.totalorder %s20, 3
      %p64 = por %p62, %p63
      %p65 = scmp.ne.s32.totalorder %s54, %s55
      %p66 = scmp.eq.s32.totalorder %s20, 0
      %p67 = por %p65, %p66
      %p68 = scmp.ne.s32.totalorder %s54, %s55
      %p69 = scmp.eq.s32.totalorder %s21, 3
      %p70 = por %p68, %p69
      %p72 = scmp.ne.s32.totalorder %s55, %s71
      %p73 = scmp.eq.s32.totalorder %s21, 0
      %p74 = por %p72, %p73
      %s75 = ssub.s32 %s15, %s22
      %p76 = scmp.eq.s32.totalorder %s75, 0
      %s78 = sadd.s32 %s77, 1
      %s79 = scalar_select %p76, %s77, %s78
      %p82 = pneg %p76
      %p83 = scmp.eq.s32.totalorder %s15, 3
      %p84 = por %p82, %p83
      %p85 = scmp.ne.s32.totalorder %s77, %s80
      %p86 = scmp.eq.s32.totalorder %s15, 0
      %p87 = por %p85, %p86
      %p88 = scmp.ne.s32.totalorder %s77, %s80
      %p89 = scmp.eq.s32.totalorder %s20, 3
      %p90 = por %p88, %p89
      %p91 = scmp.ne.s32.totalorder %s80, %s81
      %p92 = scmp.eq.s32.totalorder %s20, 0
      %p93 = por %p91, %p92
      %p94 = scmp.ne.s32.totalorder %s80, %s81
      %p95 = scmp.eq.s32.totalorder %s21, 3
      %p96 = por %p94, %p95
      %p98 = scmp.ne.s32.totalorder %s81, %s97
      %p99 = scmp.eq.s32.totalorder %s21, 0
      %p100 = por %p98, %p99
      %s101 = ssub.s32 %s15, %s22
      %p102 = scmp.eq.s32.totalorder %s101, 0
      %s104 = sadd.s32 %s103, 1
      %s105 = scalar_select %p102, %s103, %s104
      %p108 = pneg %p102
      %p109 = scmp.eq.s32.totalorder %s15, 3
      %p110 = por %p108, %p109
      %p111 = scmp.ne.s32.totalorder %s103, %s106
      %p112 = scmp.eq.s32.totalorder %s15, 0
      %p113 = por %p111, %p112
      %p114 = scmp.ne.s32.totalorder %s103, %s106
      %p115 = scmp.eq.s32.totalorder %s20, 3
      %p116 = por %p114, %p115
      %p117 = scmp.ne.s32.totalorder %s106, %s107
      %p118 = scmp.eq.s32.totalorder %s20, 0
      %p119 = por %p117, %p118
      %p120 = scmp.ne.s32.totalorder %s106, %s107
      %p121 = scmp.eq.s32.totalorder %s21, 3
      %p122 = por %p120, %p121
      %p124 = scmp.ne.s32.totalorder %s107, %s123
      %p125 = scmp.eq.s32.totalorder %s21, 0
      %p126 = por %p124, %p125
      %p127 = scmp.le.s32.totalorder 1, %s15
      %p128 = scmp.lt.s32.totalorder %s15, 5
      %p129 = pnand %p127, %p128
      %p130 = pneg %p129
      // Predicated region
      $region9: #{tpu_custom_call.1} parent=5 // pred_check
        _
      $region10: #{tpu_custom_call.1} parent=5 // pred_check_branch
        %132 = sbr.rel (%p129) target = $region12
      $region11: #{tpu_custom_call.1} parent=5 // pred_region
        %s133 = ssub.s32 %s15, 1
      $region12: #{tpu_custom_call.1} parent=5 // pred_fallthru
        _
      %p134 = scmp.lt.s32.totalorder %s15, 4
      // Predicated region
      $region13: #{tpu_custom_call.1} parent=5 // pred_check
        %p135 = pneg %p134
      $region14: #{tpu_custom_call.1} parent=5 // pred_check_branch
        %137 = sbr.rel (%p135) target = $region16
      $region15: #{tpu_custom_call.1} parent=5 // pred_region
        // Predicated region
        $region17: #{tpu_custom_call.1} parent=15 // pred_check
          %p138 = pneg %p35
        $region18: #{tpu_custom_call.1} parent=15 // pred_check_branch
          %140 = sbr.rel (%p138) target = $region20
        $region19: #{tpu_custom_call.1} parent=15 // pred_region
          %p141 = scmp.lt.s32.totalorder %s15, 3
          %s142 = scalar_select %p141, %s15, 3
          %s143 = smul.addr %s142, 8
          %s144 = scalar_lea.vmem %s0, %s143
        $region20: #{tpu_custom_call.1} parent=15 // pred_fallthru
          _
        // Predicated region
        $region21: #{tpu_custom_call.1} parent=15 // pred_check
          %p145 = pneg %p61
        $region22: #{tpu_custom_call.1} parent=15 // pred_check_branch
          %147 = sbr.rel (%p145) target = $region24
        $region23: #{tpu_custom_call.1} parent=15 // pred_region
          %s148 = sand.u32 %s51, 1
          %s149 = scalar_lea.sflag [#allocation3], %s148
          %s150 = sand.u32 %s51, 1
          %s151 = smul.addr %s150, 8
          %s152 = scalar_lea.vmem [#allocation2], %s151
          %s154 = ssub.s32 128, 128
          %155 = vsyncadd %s149, %s154
          %s156 = smul.addr %s15, 128
          %s157 = scalar_lea.hbm %s1, %s156
          %s159 = sshll.u32 %s152, 4
          %s160 = int_to_ptr.vmem [resolvable:$true] %s159
          %162 = dma.hbm_to_vmem [thread:$0]  %s157, 128, %s160, %s149
        $region24: #{tpu_custom_call.1} parent=15 // pred_fallthru
          _
        // Predicated region
        $region25: #{tpu_custom_call.1} parent=15 // pred_check
          %p163 = pneg %p87
        $region26: #{tpu_custom_call.1} parent=15 // pred_check_branch
          %165 = sbr.rel (%p163) target = $region28
        $region27: #{tpu_custom_call.1} parent=15 // pred_region
          %p166 = scmp.lt.s32.totalorder %s15, 3
          %s167 = scalar_select %p166, %s15, 3
          %s168 = smul.addr %s167, 8
          %s169 = scalar_lea.vmem %s2, %s168
        $region28: #{tpu_custom_call.1} parent=15 // pred_fallthru
          _
      $region16: #{tpu_custom_call.1} parent=5 // pred_fallthru
        _
      %p170 = scmp.le.s32.totalorder 1, %s15
      %p171 = scmp.lt.s32.totalorder %s15, 5
      %p172 = pnand %p170, %p171
      %p173 = pneg %p172
      // Predicated region
      $region29: #{tpu_custom_call.1} parent=5 // pred_check
        _
      $region30: #{tpu_custom_call.1} parent=5 // pred_check_branch
        %175 = sbr.rel (%p172) target = $region32
      $region31: #{tpu_custom_call.1} parent=5 // pred_region
        %s176 = ssub.s32 %s15, 1
        %s177 = sand.u32 %s54, 1
        %s178 = scalar_lea.sflag [#allocation3], %s177
        %s179 = sand.u32 %s54, 1
        %s180 = smul.addr %s179, 8
        %s181 = scalar_lea.vmem [#allocation2], %s180
        // Predicated region
        $region33: #{tpu_custom_call.1} parent=31 // pred_check
          %p182 = pneg %p67
        $region34: #{tpu_custom_call.1} parent=31 // pred_check_branch
          %184 = sbr.rel (%p182) target = $region36
        $region35: #{tpu_custom_call.1} parent=31 // pred_region
          %185 = dma.done %s178, 128
        $region36: #{tpu_custom_call.1} parent=31 // pred_fallthru
          _
        %p186 = scmp.lt.s32.totalorder %s20, 3
        %s187 = scalar_select %p186, %s20, 3
        %s188 = smul.addr %s187, 8
        %s189 = scalar_lea.vmem %s0, %s188
        %p190 = pneg %p41
        %p191 = pneg %p38
        %s192 = sand.u32 %s54, 1
        %s193 = scalar_lea.sflag [#allocation3], %s192
        %s194 = sand.u32 %s54, 1
        %s195 = smul.addr %s194, 8
        %s196 = scalar_lea.vmem [#allocation2], %s195
        %p197 = pneg %p67
        %p198 = pneg %p64
        %p199 = scmp.lt.s32.totalorder %s20, 3
        %s200 = scalar_select %p199, %s20, 3
        %s201 = smul.addr %s200, 8
        %s202 = scalar_lea.vmem %s2, %s201
        %p203 = pneg %p93
        %p204 = pneg %p90
        %p205 = pneg %p119
        %p206 = pneg %p116
        %s207 = sand.u32 %s106, 1
        %s208 = scalar_lea.sflag [#allocation4], %s207
        %s209 = sand.u32 %s106, 1
        %s210 = smul.addr %s209, 8
        %s211 = scalar_lea.vmem [#allocation5], %s210
        %p212 = scmp.lt.s32.totalorder %s20, 3
        %s213 = scalar_select %p212, %s20, 3
        %s214 = smul.addr %s213, 8
        %s215 = scalar_lea.vmem %s0, %s214
        %p216 = scmp.lt.s32.totalorder %s20, 3
        %s217 = scalar_select %p216, %s20, 3
        %s218 = smul.addr %s217, 8
        %s219 = scalar_lea.vmem %s2, %s218
        %v220 = vld [vmem:[%s215] sm:$0xff]
        %v221 = vld [vmem:[%s181] sm:$0xff]
        %v222 = vld [vmem:[%s219] sm:$0xff]
        %v223 = vlaneseq
        %v224 = vand.u32 %v223, 127
        %225 = vset.pattern.permute.xlu0 0
        %226 = vperm.xlu0 %225, %v222
        %v227 = vpop.permute.xlu0 %226
        %vm228 = vcmp.eq.s32.totalorder %v224, %v227
        %v229 = vsel %vm228, 1, 0
        %v230 = vcvt.s32.f32 %v229
        %231 = vmax.xlane.f32.xlu0 %v220
        %v232 = vpop.xlane.xlu0 %231
        %v233 = vsub.f32 %v220, %v232
        %v234 = vmul.f32 %v233, 1.442695
        %v235 = vpow.pop %v234
        %236 = vadd.xlane.f32.xlu0 %v235
        %v237 = vpop.xlane.xlu0 %236
        %v238 = vlog2.pop %v237
        %v239 = vmul.f32 %v238, 0.6931472
        %v240 = vmul.f32 %v233, %v230
        %241 = vadd.xlane.f32.xlu0 %v240
        %v242 = vpop.xlane.xlu0 %241
        %v243 = vsub.f32 %v239, %v242
        %244 = vmax.xlane.f32.xlu0 %v221
        %v245 = vpop.xlane.xlu0 %244
        %v246 = vsub.f32 %v221, %v245
        %v247 = vmul.f32 %v246, 1.442695
        %v248 = vpow.pop %v247
        %249 = vadd.xlane.f32.xlu0 %v248
        %v250 = vpop.xlane.xlu0 %249
        %v251 = vlog2.pop %v250
        %v252 = vmul.f32 %v251, 0.6931472
        %v253 = vmul.f32 %v246, %v230
        %254 = vadd.xlane.f32.xlu0 %v253
        %v255 = vpop.xlane.xlu0 %254
        %v256 = vsub.f32 %v252, %v255
        %v257 = vadd.f32 %v243, %v256
        %v258 = vlaneseq
        %v259 = vshrl.u32 %v258, 7
        %s260 = smul.u32 %s20, 8
        %v261 = vstv %s260
        %v262 = vadd.s32 %v259, %v261
        %vm263 = vcmp.lt.s32.totalorder %v262, 28
        %v264 = vsel %vm263, %v257, 0.0
        %vm265 = vcmask 7168
        %v266 = vsel %vm265, %v264, 0.0
        %267 = vadd.xlane.f32.xlu0 %v266
        %v268 = vpop.xlane.xlu0 %267
        %v269 = vrot.slane %v268, 4
        %v270 = vadd.f32 %v268, %v269
        %v271 = vrot.slane %v270, 2
        %v272 = vadd.f32 %v270, %v271
        %v273 = vrot.slane %v272, 1
        %v274 = vadd.f32 %v272, %v273
        %s275 = vtos %v274
        %s276 = smul.f32 %s275, 0.017857144
        %v277 = vstv %s276
        %278 = vst [vmem:[%s211] sm:$0xff] %v277
        %s279 = sand.u32 %s106, 1
        %s280 = scalar_lea.sflag [#allocation4], %s279
        %s281 = sand.u32 %s106, 1
        %s282 = smul.addr %s281, 8
        %s283 = scalar_lea.vmem [#allocation5], %s282
        // Predicated region
        $region37: #{tpu_custom_call.1} parent=31 // pred_check
          %p284 = pneg %p116
        $region38: #{tpu_custom_call.1} parent=31 // pred_check_branch
          %286 = sbr.rel (%p284) target = $region40
        $region39: #{tpu_custom_call.1} parent=31 // pred_region
          %s288 = ssub.s32 128, 128
          %289 = vsyncadd %s280, %s288
          %s290 = smul.addr %s20, 128
          %s291 = scalar_lea.hbm %s3, %s290
          %s293 = sshll.u32 %s283, 4
          %s294 = int_to_ptr.vmem [resolvable:$true] %s293
          %296 = dma.vmem_to_hbm [thread:$0]  %s294, 128, %s291, %s280
        $region40: #{tpu_custom_call.1} parent=31 // pred_fallthru
          _
      $region32: #{tpu_custom_call.1} parent=5 // pred_fallthru
        _
      %p297 = scmp.le.s32.totalorder 2, %s15
      // Predicated region
      $region41: #{tpu_custom_call.1} parent=5 // pred_check
        %p298 = pneg %p297
      $region42: #{tpu_custom_call.1} parent=5 // pred_check_branch
        %300 = sbr.rel (%p298) target = $region44
      $region43: #{tpu_custom_call.1} parent=5 // pred_region
        %s301 = ssub.s32 %s15, 2
        // Predicated region
        $region45: #{tpu_custom_call.1} parent=43 // pred_check
          %p302 = pneg %p122
        $region46: #{tpu_custom_call.1} parent=43 // pred_check_branch
          %304 = sbr.rel (%p302) target = $region48
        $region47: #{tpu_custom_call.1} parent=43 // pred_region
          %s305 = sand.u32 %s107, 1
          %s306 = scalar_lea.sflag [#allocation4], %s305
          %s307 = sand.u32 %s107, 1
          %s308 = smul.addr %s307, 8
          %s309 = scalar_lea.vmem [#allocation5], %s308
          %310 = dma.done %s306, 128
        $region48: #{tpu_custom_call.1} parent=43 // pred_fallthru
          _
      $region44: #{tpu_custom_call.1} parent=5 // pred_fallthru
        _
    $region6: #{tpu_custom_call.1} parent=1 // loop_footer
      %s19 = sadd.s32 1, %s15
    $region7: #{tpu_custom_call.1} parent=1 // loop_footer_branch
      %14 = sbr.rel target = $region3
    $region8: #{tpu_custom_call.1} parent=1 // loop_exit
      _
    %311 = vsyncpa [#allocation3], 1
    %s312 = scalar_lea.sflag [#allocation3], 1
    %313 = vsyncpa %s312, 1
    %314 = vsyncpa [#allocation4], 1
    %s315 = scalar_lea.sflag [#allocation4], 1
    %316 = vsyncpa %s315, 1

</llo_original>
